<compile_context>
chip_gen: v5e
topology: v5e:2x2
jax: 0.10.0
libtpu: 0.0.40
codegen_flags: <defaults>
</compile_context>

<pallas_src>
import functools

import jax
import jax.numpy as jnp
from jax.experimental import pallas as pl
from jax.experimental.pallas import tpu as pltpu


_VMEM_BUDGET = 40 * 1024 * 1024     # tile-selection budget (v7x-safe)
_VMEM_LIMIT = 48 * 1024 * 1024      # scoped VMEM limit handed to Mosaic


# --------------------------------------------------------------------------- #
# Kernels
# --------------------------------------------------------------------------- #
def _conv1d_fullk_kernel(x_ref, w_ref, b_ref, o_ref):
    # x_ref: (bm, nx), w_ref: (nx, bn), b_ref: (1, bn), o_ref: (bm, bn).
    acc = jnp.dot(x_ref[...], w_ref[...], preferred_element_type=jnp.float32)
    o_ref[...] = (acc + b_ref[...].astype(jnp.float32)).astype(o_ref.dtype)


def _conv1d_ktiled_kernel(x_ref, w_ref, b_ref, o_ref, acc_ref):
    # x_ref: (bm, bk), w_ref: (bk, bn), b_ref: (1, bn), o/acc: (bm, bn).
    k = pl.program_id(2)
    prod = jnp.dot(x_ref[...], w_ref[...], preferred_element_type=jnp.float32)

    @pl.when(k == 0)
    def _first():                 # direct write: no broadcast-init + VALU add
        acc_ref[...] = prod

    @pl.when(k != 0)
    def _accumulate():
        acc_ref[...] += prod

    @pl.when(k == pl.num_programs(2) - 1)
    def _store():                 # bias folded into the single output store
        o_ref[...] = (acc_ref[...]
                      + b_ref[...].astype(jnp.float32)).astype(o_ref.dtype)


# --------------------------------------------------------------------------- #
# Tile selection
# --------------------------------------------------------------------------- #
def _dedupe(seq):
    out = []
    for v in seq:
        if v not in out:
            out.append(v)
    return out


def _fits(bm, bn, bk, gk, in_itemsize, out_itemsize, budget):
    in_bufs = 2 if gk == 1 else 3           # Buffered(3) on x/W when K-tiled
    bytes_needed = (in_bufs * bm * bk * in_itemsize      # x tile
                    + in_bufs * bk * bn * in_itemsize    # W tile
                    + 2 * bm * bn * out_itemsize         # output tile
                    + 2 * bn * 4                         # bias row
                    + (bm * bn * 4 if gk > 1 else 0))    # f32 accumulator
    return bytes_needed <= budget


def _select_tiles(m, nx, nf, in_itemsize, out_itemsize, budget):
    """Pick (bm, bn, bk): biggest output tile that fits, full-K preferred."""
    small_m = m <= 256                       # decode / small-batch regime

    bm_opts = _dedupe(([m] if m <= 1024 else [])
                      + [c for c in (1024, 512, 256, 128, 64, 32, 16, 8)
                         if c < m])
    if small_m:
        # One wide pass over nf so W is streamed from HBM exactly once.
        bn_opts = _dedupe([nf] + [c for c in (2048, 1024, 512, 256, 128)
                                  if c < nf])
    else:
        bn_opts = _dedupe(([nf] if nf <= 512 else [])
                          + [c for c in (512, 256, 128) if c <= nf]
                          + ([nf] if nf < 128 else []))
    # K tile: full nx preferred; otherwise a divisor that is a multiple of 128
    # (an OOB K tail would feed garbage into the reduction).
    bk_opts = _dedupe([nx] + [c for c in (1024, 768, 512, 384, 256, 128)
                              if c < nx and nx % c == 0])

    for bk in bk_opts:                        # full-K first
        gk = max(nx // bk, 1)
        for bm in bm_opts:                    # keep bm big: cuts W re-streaming
            for bn in bn_opts:
                if _fits(bm, bn, bk, gk, in_itemsize, out_itemsize, budget):
                    return bm, bn, bk
    # Pathological shapes: smallest config (raise _VMEM_LIMIT if this OOMs).
    return bm_opts[-1], bn_opts[-1], bk_opts[-1]


# --------------------------------------------------------------------------- #
# Wrapper
# --------------------------------------------------------------------------- #
@functools.partial(jax.jit,
                   static_argnames=("compute_dtype", "bm", "bn", "bk"))
def conv1d(x, weight, bias, *, compute_dtype=jnp.bfloat16,
           bm=None, bn=None, bk=None):
    """GPT-2 Conv1D forward: (..., nx) @ (nx, nf) + (nf,) -> (..., nf)."""
    nx, nf = weight.shape
    assert x.shape[-1] == nx
    size_out = x.shape[:-1] + (nf,)
    out_dtype = x.dtype

    x2 = x.reshape(-1, nx)
    m = x2.shape[0]

    # bf16 operands, f32 accumulation inside the kernel.
    x2 = x2.astype(compute_dtype)
    w = weight.astype(compute_dtype)
    bias2 = bias.reshape(1, nf).astype(jnp.float32)

    in_itemsize = jnp.dtype(compute_dtype).itemsize
    out_itemsize = jnp.dtype(out_dtype).itemsize

    abm, abn, abk = _select_tiles(m, nx, nf, in_itemsize, out_itemsize,
                                  _VMEM_BUDGET)
    bm = abm if bm is None else min(bm, m)
    bn = abn if bn is None else min(bn, nf)
    bk = abk if bk is None else min(bk, nx)
    if bk != nx and nx % bk != 0:
        bk = nx                  # reduction tile must divide nx exactly

    gm = pl.cdiv(m, bm)          # ragged M tail: OOB stores are masked
    gn = pl.cdiv(nf, bn)         # ragged N tail: OOB stores are masked
    gk = nx // bk

    # v7x megacore: when the M axis can be split, keep N "arbitrary" so the
    # two cores partition x instead of both fetching identical x tiles.
    mn_sem = ("parallel", "arbitrary") if gm >= 2 else ("arbitrary", "parallel")

    cost = pl.CostEstimate(
        flops=2 * m * nx * nf,
        transcendentals=0,
        bytes_accessed=(gn * m * nx * in_itemsize      # x streamed per N tile
                        + gm * nx * nf * in_itemsize   # W streamed per M tile
                        + m * nf * out_itemsize        # output written once
                        + nf * 4))                     # bias

    if gk == 1:
        # Full-K: 2-D grid, no accumulator scratch, single store per tile.
        grid_spec = pltpu.PrefetchScalarGridSpec(
            num_scalar_prefetch=0,
            grid=(gm, gn),
            in_specs=[
                pl.BlockSpec((bm, nx), lambda i, j: (i, 0)),   # x tile
                pl.BlockSpec((nx, bn), lambda i, j: (0, j)),   # W tile
                pl.BlockSpec((1, bn), lambda i, j: (0, j)),    # bias row
            ],
            out_specs=pl.BlockSpec((bm, bn), lambda i, j: (i, j)),
        )
        kernel = _conv1d_fullk_kernel
        dim_sem = mn_sem
    else:
        # K-tiled fallback: shallow K pipeline -> 3-deep buffering on x/W.
        grid_spec = pltpu.PrefetchScalarGridSpec(
            num_scalar_prefetch=0,
            grid=(gm, gn, gk),
            in_specs=[
                pl.BlockSpec((bm, bk), lambda i, j, k: (i, k),
                             pipeline_mode=pl.Buffered(3)),
                pl.BlockSpec((bk, bn), lambda i, j, k: (k, j),
                             pipeline_mode=pl.Buffered(3)),
                pl.BlockSpec((1, bn), lambda i, j, k: (0, j)),
            ],
            out_specs=pl.BlockSpec((bm, bn), lambda i, j, k: (i, j)),
            scratch_shapes=[pltpu.VMEM((bm, bn), jnp.float32)],
        )
        kernel = _conv1d_ktiled_kernel
        dim_sem = mn_sem + ("arbitrary",)

    out = pl.pallas_call(
        kernel,
        out_shape=jax.ShapeDtypeStruct((m, nf), out_dtype),
        grid_spec=grid_spec,
        compiler_params=pltpu.CompilerParams(
            dimension_semantics=dim_sem,
            vmem_limit_bytes=_VMEM_LIMIT,
        ),
        cost_estimate=cost,
    )(x2, w, bias2)

    return out.reshape(size_out)


if __name__ == "__main__":
    key = jax.random.PRNGKey(0)
    kx, kw, kx2, kw2, kb2, kx3 = jax.random.split(key, 6)

    # --- 1) Small, module-faithful check (f32 compute path) -----------------
    batch, seq, nx, nf = 2, 8, 32, 64
    weight = (0.02 * jax.random.normal(kw, (nx, nf))).astype(jnp.float32)
    bias = jnp.zeros((nf,), dtype=jnp.float32)          # module init: zeros
    x = jax.random.normal(kx, (batch, seq, nx), dtype=jnp.float32)

    y = conv1d(x, weight, bias, compute_dtype=jnp.float32)
    jax.block_until_ready(y)
    y_ref = (x.reshape(-1, nx) @ weight + bias).reshape(batch, seq, nf)
    assert y.shape == (batch, seq, nf)
    assert jnp.allclose(y, y_ref, atol=1e-5, rtol=1e-5)

    # --- 2) GPT-2-like prefill: bf16 operands, full-K 2-D grid, ragged M ----
    b2, s2, nx2, nf2 = 3, 350, 768, 1024     # m=1050 -> gm=2 (ragged), gn=2
    w_big = (0.02 * jax.random.normal(kw2, (nx2, nf2))).astype(jnp.float32)
    b_big = (0.02 * jax.random.normal(kb2, (nf2,))).astype(jnp.float32)
    x_big = jax.random.normal(kx2, (b2, s2, nx2), dtype=jnp.float32)
    y_big_ref = (x_big.reshape(-1, nx2) @ w_big + b_big).reshape(b2, s2, nf2)

    y_big = conv1d(x_big, w_big, b_big)                 # default bf16 compute
    jax.block_until_ready(y_big)
    assert y_big.shape == (b2, s2, nf2)
    assert jnp.allclose(y_big, y_big_ref, atol=3e-2, rtol=3e-2)

    # --- 3) Same problem forced onto the K-tiled fallback kernel ------------
    y_kt = conv1d(x_big, w_big, b_big, bk=256)          # gk=3, Buffered(3)
    jax.block_until_ready(y_kt)
    assert jnp.allclose(y_kt, y_big_ref, atol=3e-2, rtol=3e-2)

    # --- 4) Decode-like small m: one wide pass (bn = nf), full K ------------
    x_dec = jax.random.normal(kx3, (8, 1, nx2), dtype=jnp.float32)   # m = 8
    y_dec = conv1d(x_dec, w_big, b_big)
    jax.block_until_ready(y_dec)
    y_dec_ref = (x_dec.reshape(-1, nx2) @ w_big + b_big).reshape(8, 1, nf2)
    assert jnp.allclose(y_dec, y_dec_ref, atol=3e-2, rtol=3e-2)

    print("KERNEL_OK")
</pallas_src>

<mosaic_0001>
module attributes {stable_mosaic.version = 11 : i64} {
  func.func @_conv1d_fullk_kernel(%arg0: i32, %arg1: i32, %arg2: memref<16x32xf32, #tpu.memory_space<vmem>>, %arg3: memref<32x64xf32, #tpu.memory_space<vmem>>, %arg4: memref<1x64xf32, #tpu.memory_space<vmem>>, %arg5: memref<16x64xf32, #tpu.memory_space<vmem>>) attributes {dimension_semantics = [#tpu.dimension_semantics<arbitrary>, #tpu.dimension_semantics<parallel>], iteration_bounds = array<i64: 1, 1>, scalar_prefetch = 0 : i64, scratch_operands = 0 : i64, tpu.core_type = #tpu.core_type<tc>, window_params = [{transform_indices = @transform_0, window_bounds = array<i64: 16, 32>}, {transform_indices = @transform_1, window_bounds = array<i64: 32, 64>}, {transform_indices = @transform_2, window_bounds = array<i64: 1, 64>}, {transform_indices = @transform_3, window_bounds = array<i64: 16, 64>}]} {
    %c0 = arith.constant 0 : index
    %c0_0 = arith.constant 0 : index
    %0 = vector.load %arg2[%c0, %c0_0] : memref<16x32xf32, #tpu.memory_space<vmem>>, vector<16x32xf32>
    %c0_1 = arith.constant 0 : index
    %c0_2 = arith.constant 0 : index
    %1 = vector.load %arg3[%c0_1, %c0_2] : memref<32x64xf32, #tpu.memory_space<vmem>>, vector<32x64xf32>
    %cst = arith.constant dense<0.000000e+00> : vector<16x64xf32>
    %2 = tpu.matmul %0, %1, %cst {dimension_numbers = #tpu.dot_dimension_numbers<[1], [0], [0], [1], [0, 0, 1, 1], [], []>} : vector<16x32xf32>, vector<32x64xf32>, vector<16x64xf32> -> vector<16x64xf32>
    %c0_3 = arith.constant 0 : index
    %c0_4 = arith.constant 0 : index
    %3 = vector.load %arg4[%c0_3, %c0_4] : memref<1x64xf32, #tpu.memory_space<vmem>>, vector<1x64xf32>
    %4 = vector.broadcast %3 : vector<1x64xf32> to vector<16x64xf32>
    %5 = arith.addf %2, %4 : vector<16x64xf32>
    %c0_5 = arith.constant 0 : index
    %c0_6 = arith.constant 0 : index
    %6 = vector.load %arg5[%c0_5, %c0_6] : memref<16x64xf32, #tpu.memory_space<vmem>>, vector<16x64xf32>
    tpu.vector_store %arg5[%c0_5, %c0_6], %5 {strides = array<i32>} : memref<16x64xf32, #tpu.memory_space<vmem>>, vector<16x64xf32>,
    return
  }
  func.func @transform_0(%arg0: i32, %arg1: i32) -> (i32, i32) {
    %c0_i32 = arith.constant 0 : i32
    %c0_i32_0 = arith.constant 0 : i32
    return %arg0, %c0_i32 : i32, i32
  }
  func.func @transform_1(%arg0: i32, %arg1: i32) -> (i32, i32) {
    %c0_i32 = arith.constant 0 : i32
    %c0_i32_0 = arith.constant 0 : i32
    return %c0_i32, %arg1 : i32, i32
  }
  func.func @transform_2(%arg0: i32, %arg1: i32) -> (i32, i32) {
    %c0_i32 = arith.constant 0 : i32
    %c0_i32_0 = arith.constant 0 : i32
    return %c0_i32, %arg1 : i32, i32
  }
  func.func @transform_3(%arg0: i32, %arg1: i32) -> (i32, i32) {
    %c0_i32 = arith.constant 0 : i32
    return %arg0, %arg1 : i32, i32
  }
}

</mosaic_0001>

<llo_original>
// kernel: conv1d.1
$region0: #{conv1d.1}
  #allocation0 [shape = 'u32[]', space=smem, size = 0x4, offset = 0x4, fixed_abs, tag = 'smem constant byte address 0x4 - core index']
  #allocation1 [shape = 'u32[72,128]{1,0:T(1,128)}', space=vmem, size = 0x9000, scoped, tag = 'internal scratch']
  %s0 = inlined_call_operand.hbm [shape: f32[16,32], index: 0, kind: input, shape index: {}]
  %s1 = inlined_call_operand.hbm [shape: f32[32,64], index: 1, kind: input, shape index: {}]
  %s2 = inlined_call_operand.vmem [shape: f32[1,64], index: 2, kind: input, shape index: {}]
  %s3 = inlined_call_operand.hbm [shape: f32[16,64], index: 3, kind: output, shape index: {}]
  %s4 = sld [smem:[#allocation0]]
  $region30: #{conv1d.1} parent=0
    _
  %s6 = ssub.s32 1, %s4
  %s7 = scalar_select 0, %s6, %s4
  $region1: #{conv1d.1} parent=0
    #allocation2 [shape = 'u8[8192]{0}', space=vmem, size = 0x2000, scoped, tag = 'input window, operand 0, single buffered']
    #allocation3 [shape = 's32[1]{0}', space=sflag, size = 0x4, scoped, tag = 'scoped memory for conv1d.1']
    #allocation4 [shape = 's32[1]{0}', space=sflag, size = 0x4, scoped, tag = 'scoped memory for conv1d.1']
    #allocation5 [shape = 'u8[16384]{0}', space=vmem, size = 0x4000, scoped, tag = 'input window, operand 1, single buffered']
    #allocation6 [shape = 's32[1]{0}', space=sflag, size = 0x4, scoped, tag = 'scoped memory for conv1d.1']
    #allocation7 [shape = 'u8[8192]{0}', space=vmem, size = 0x2000, scoped, tag = 'output window, operand 0, single buffered']
    %8 = vsyncpa [#allocation3], 0
    %9 = vsyncpa [#allocation6], 0
    %10 = vsyncpa [#allocation4], 0
    // Predicated region
    $region2: #{conv1d.1} parent=1 // pred_check
      _
    $region3: #{conv1d.1} parent=1 // pred_check_branch
      %12 = sbr.rel (0) target = $region5
    $region4: #{conv1d.1} parent=1 // pred_region
      %14 = vsyncadd [#allocation3], 0
      %s15 = sshll.u32 %s0, 4
      %s16 = int_to_ptr.hbm [resolvable:$true] %s15
      %s17 = sshll.u32 [#allocation2], 4
      %s18 = int_to_ptr.vmem [resolvable:$true] %s17
      %23 = dma.hbm_to_vmem [thread:$0]  %s16, 256, %s18, [#allocation3], 128, 128, 8
    $region5: #{conv1d.1} parent=1 // pred_fallthru
      _
    // Predicated region
    $region6: #{conv1d.1} parent=1 // pred_check
      _
    $region7: #{conv1d.1} parent=1 // pred_check_branch
      %25 = sbr.rel (0) target = $region9
    $region8: #{conv1d.1} parent=1 // pred_region
      %27 = vsyncadd [#allocation6], 0
      %s28 = sshll.u32 %s1, 4
      %s29 = int_to_ptr.hbm [resolvable:$true] %s28
      %s30 = sshll.u32 [#allocation5], 4
      %s31 = int_to_ptr.vmem [resolvable:$true] %s30
      %36 = dma.hbm_to_vmem [thread:$0]  %s29, 512, %s31, [#allocation6], 128, 128, 8
    $region9: #{conv1d.1} parent=1 // pred_fallthru
      _
    // Predicated region
    $region10: #{conv1d.1} parent=1 // pred_check
      _
    $region11: #{conv1d.1} parent=1 // pred_check_branch
      %38 = sbr.rel (0) target = $region13
    $region12: #{conv1d.1} parent=1 // pred_region
      _
    $region13: #{conv1d.1} parent=1 // pred_fallthru
      _
    // Predicated region
    $region14: #{conv1d.1} parent=1 // pred_check
      _
    $region15: #{conv1d.1} parent=1 // pred_check_branch
      %40 = sbr.rel (0) target = $region17
    $region16: #{conv1d.1} parent=1 // pred_region
      %42 = dma.done [#allocation3], 256
    $region17: #{conv1d.1} parent=1 // pred_fallthru
      _
    // Predicated region
    $region18: #{conv1d.1} parent=1 // pred_check
      _
    $region19: #{conv1d.1} parent=1 // pred_check_branch
      %44 = sbr.rel (0) target = $region21
    $region20: #{conv1d.1} parent=1 // pred_region
      %46 = dma.done [#allocation6], 512
    $region21: #{conv1d.1} parent=1 // pred_fallthru
      _
    %v47 = vld [vmem:[#allocation2] sm:$0xff]
    %v48 = vld [vmem:[#allocation2 + $0x8] sm:$0xff]
    %v49 = vld [vmem:[#allocation5] sm:$0xff]
    %v50 = vld [vmem:[#allocation5 + $0x8] sm:$0xff]
    %v51 = vld [vmem:[#allocation5 + $0x10] sm:$0xff]
    %v52 = vld [vmem:[#allocation5 + $0x18] sm:$0xff]
    %v53 = vld [vmem:[%s2] sm:$0x1]
    %v55 = vperm.slane %v53, 0
    %vm57 = vcmask 261120
    %v59 = vsel %vm57, %v47, 0
    %v62 = vsel %vm57, %v48, 0
    %64 = vmatpush.msra.mxu0 0.0
    %65 = vmatpush.msra.mxu0 0.0
    %66 = vmatpush.msra.mxu0 0.0
    %67 = vmatpush.msra.mxu0 0.0
    %68 = vmatpush.msra.mxu0 0.0
    %69 = vmatpush.msra.mxu0 0.0
    %70 = vmatpush.msra.mxu0 0.0
    %71 = vmatpush.msra.mxu0 0.0
    %72 = vmatpush.msra.mxu0 0.0
    %73 = vmatpush.msra.mxu0 0.0
    %74 = vmatpush.msra.mxu0 0.0
    %75 = vmatpush.msra.mxu0 0.0
    %76 = vmatpush.msra.mxu0 %v52
    %77 = vmatpush.msra.mxu0 %v51
    %78 = vmatpush.msra.mxu0 %v50
    %79 = vmatpush.msra.mxu0 %v49
    %80 = vmatmul.f32.gmra.mxu0 %v59
    %v81 = vpop.f32.mrf.mxu0
    %v82 = vadd.f32 %v55, %v81
    %83 = vmatmul.f32.gmra.mxu0 %v62
    %v84 = vpop.f32.mrf.mxu0
    %v85 = vadd.f32 %v55, %v84
    %86 = vdwg.mxu0
    %vm87 = vcmask 523264
    %88 = vst.msk [vmem:[#allocation7] sm:$0xff] %vm87, %v82
    %89 = vst.msk [vmem:[#allocation7 + $0x8] sm:$0xff] %vm87, %v85
    // Predicated region
    $region22: #{conv1d.1} parent=1 // pred_check
      _
    $region23: #{conv1d.1} parent=1 // pred_check_branch
      %91 = sbr.rel (0) target = $region25
    $region24: #{conv1d.1} parent=1 // pred_region
      %93 = vsyncadd [#allocation4], 0
      %s94 = sshll.u32 [#allocation7], 4
      %s95 = int_to_ptr.vmem [resolvable:$true] %s94
      %s96 = sshll.u32 %s3, 4
      %s97 = int_to_ptr.hbm [resolvable:$true] %s96
      %102 = dma.vmem_to_hbm [thread:$0]  %s95, 256, %s97, [#allocation4], 128, 128, 8
    $region25: #{conv1d.1} parent=1 // pred_fallthru
      _
    // Predicated region
    $region26: #{conv1d.1} parent=1 // pred_check
      _
    $region27: #{conv1d.1} parent=1 // pred_check_branch
      %104 = sbr.rel (0) target = $region29
    $region28: #{conv1d.1} parent=1 // pred_region
      %106 = dma.done [#allocation4], 256
    $region29: #{conv1d.1} parent=1 // pred_fallthru
      _
    %107 = vsyncpa [#allocation3], 1
    %108 = vsyncpa [#allocation6], 1
    %109 = vsyncpa [#allocation4], 1

</llo_original>
